<compile_context>
chip_gen: v5e
topology: v5e:2x2
jax: 0.10.0
libtpu: 0.0.40
codegen_flags: <defaults>
</compile_context>

<pallas_src>
import functools

import jax
import jax.numpy as jnp
from jax.experimental import pallas as pl
from jax.experimental.pallas import tpu as pltpu


# =============================== Pallas kernel ===============================

def _patch_recon_kernel(x_ref, w_ref, b_ref, o_ref):
    """o = x @ W + b for one row tile.

    x_ref: (TM, D)      bf16 patch rows (batch folded into M)
    w_ref: (D, C*ph*pw) bf16 flattened ConvTranspose2d weight (grid-invariant)
    b_ref: (1, C*ph*pw) f32 per-channel bias broadcast over patch pixels
    o_ref: (TM, C*ph*pw)
    """
    acc = jnp.dot(x_ref[...], w_ref[...],
                  preferred_element_type=jnp.float32)      # MXU, f32 accumulate
    o_ref[...] = (acc + b_ref[...]).astype(o_ref.dtype)    # f32 bias add + store


def patch_reconstruct(patches, weight, bias, pad_info, patch_size, tm=512):
    """patches: (B, N, D); weight: (D, C, ph, pw) (ConvTranspose2d layout);
    bias: (C,); pad_info: (H_orig, W_orig, pad_h, pad_w) as static Python ints."""
    H, W, pad_h, pad_w = pad_info
    ph, pw = patch_size
    B, N, D = patches.shape
    gh = (H + pad_h) // ph
    gw = (W + pad_w) // pw
    assert N == gh * gw, "patch count mismatch"
    C = weight.shape[1]
    Dout = C * ph * pw
    M = B * N

    # Hoisted casts: bf16 MXU operands prepared once, outside the kernel.
    x2d = patches.reshape(M, D).astype(jnp.bfloat16)               # (M, D)
    w_flat = weight.reshape(D, Dout).astype(jnp.bfloat16)          # (D, C*ph*pw)
    b_flat = jnp.repeat(bias, ph * pw).reshape(1, Dout).astype(jnp.float32)

    # Row tile: 512 (multiple of 256 for v6e/v7x, of 128 for v5e); if the whole
    # problem is smaller than one tile, cover the full extent with one block.
    tm = min(tm, M)
    grid = (pl.cdiv(M, tm),)

    cost = pl.CostEstimate(
        flops=2 * M * D * Dout,
        transcendentals=0,
        bytes_accessed=(M * D * 2            # x (bf16)
                        + D * Dout * 2       # W (bf16)
                        + Dout * 4           # bias (f32)
                        + M * Dout * 4),     # out (f32)
    )

    rec = pl.pallas_call(
        _patch_recon_kernel,
        out_shape=jax.ShapeDtypeStruct((M, Dout), patches.dtype),
        grid=grid,
        in_specs=[pl.BlockSpec((tm, D), lambda i: (i, 0)),
                  pl.BlockSpec((D, Dout), lambda i: (0, 0)),
                  pl.BlockSpec((1, Dout), lambda i: (0, 0))],
        out_specs=pl.BlockSpec((tm, Dout), lambda i: (i, 0)),
        compiler_params=pltpu.CompilerParams(dimension_semantics=("parallel",)),
        cost_estimate=cost,
    )(x2d, w_flat, b_flat)                                  # (M, C*ph*pw)

    # Layout-only glue: scatter each (C, ph, pw) patch back to NCHW and crop.
    img = (rec.reshape(B, gh, gw, C, ph, pw)
              .transpose(0, 3, 1, 4, 2, 5)
              .reshape(B, C, gh * ph, gw * pw))
    return img[:, :, :H, :W]


# =============================== reference (pure jnp) ========================

def reference_patch_reconstruct(patches, weight, bias, pad_info, patch_size):
    """Direct ConvTranspose2d(kernel=stride=patch) semantics, f32 einsum."""
    H, W, pad_h, pad_w = pad_info
    ph, pw = patch_size
    B, N, D = patches.shape
    gh, gw = (H + pad_h) // ph, (W + pad_w) // pw
    C = weight.shape[1]
    # matches torch: x = patches.transpose(1, 2).reshape(B, D, gh, gw)
    x = jnp.transpose(patches, (0, 2, 1)).reshape(B, D, gh, gw)
    out = jnp.einsum('bdij,dcuv->bciujv', x, weight,
                     precision=jax.lax.Precision.HIGHEST)
    out = out.reshape(B, C, gh * ph, gw * pw) + bias[None, :, None, None]
    return out[:, :, :H, :W]


# =============================== main ========================================

if __name__ == "__main__":
    PATCH = (8, 8)
    EMBED_DIM = 32
    OUT_CHANS = 4
    H_ORIG, W_ORIG = 30, 30          # exercises the final crop
    PAD_H, PAD_W = 2, 2              # padded image is 32 x 32
    GH = (H_ORIG + PAD_H) // PATCH[0]
    GW = (W_ORIG + PAD_W) // PATCH[1]
    B = 2
    N = GH * GW                      # 16 patches

    key = jax.random.PRNGKey(0)
    k_p, k_w, k_b = jax.random.split(key, 3)
    patches = jax.random.normal(k_p, (B, N, EMBED_DIM), jnp.float32)
    weight = jax.random.normal(k_w, (EMBED_DIM, OUT_CHANS, PATCH[0], PATCH[1]),
                               jnp.float32) * 0.02
    bias = jax.random.normal(k_b, (OUT_CHANS,), jnp.float32) * 0.02

    pad_info = (H_ORIG, W_ORIG, PAD_H, PAD_W)
    fwd = jax.jit(functools.partial(patch_reconstruct,
                                    pad_info=pad_info, patch_size=PATCH))
    out = fwd(patches, weight, bias)
    jax.block_until_ready(out)

    assert out.shape == (B, OUT_CHANS, H_ORIG, W_ORIG), out.shape

    ref = reference_patch_reconstruct(patches, weight, bias, pad_info, PATCH)
    max_err = float(jnp.max(jnp.abs(out - ref)))
    assert jnp.allclose(out, ref, atol=1e-2, rtol=1e-2), f"mismatch, max_err={max_err}"

    print("KERNEL_OK")
</pallas_src>

<mosaic_0001>
module attributes {stable_mosaic.version = 11 : i64} {
  func.func @_patch_recon_kernel(%arg0: i32, %arg1: memref<32x32xbf16, #tpu.memory_space<vmem>>, %arg2: memref<32x256xbf16, #tpu.memory_space<vmem>>, %arg3: memref<1x256xf32, #tpu.memory_space<vmem>>, %arg4: memref<32x256xf32, #tpu.memory_space<vmem>>) attributes {dimension_semantics = [#tpu.dimension_semantics<parallel>], iteration_bounds = array<i64: 1>, scalar_prefetch = 0 : i64, scratch_operands = 0 : i64, tpu.core_type = #tpu.core_type<tc>, window_params = [{transform_indices = @transform_0, window_bounds = array<i64: 32, 32>}, {pipeline_mode = #tpu.pipeline_mode<synchronous>, transform_indices = @transform_1, window_bounds = array<i64: 32, 256>}, {pipeline_mode = #tpu.pipeline_mode<synchronous>, transform_indices = @transform_2, window_bounds = array<i64: 1, 256>}, {transform_indices = @transform_3, window_bounds = array<i64: 32, 256>}]} {
    %c0 = arith.constant 0 : index
    %c0_0 = arith.constant 0 : index
    %0 = vector.load %arg1[%c0, %c0_0] : memref<32x32xbf16, #tpu.memory_space<vmem>>, vector<32x32xbf16>
    %c0_1 = arith.constant 0 : index
    %c0_2 = arith.constant 0 : index
    %1 = vector.load %arg2[%c0_1, %c0_2] : memref<32x256xbf16, #tpu.memory_space<vmem>>, vector<32x256xbf16>
    %cst = arith.constant dense<0.000000e+00> : vector<32x256xf32>
    %2 = tpu.matmul %0, %1, %cst {dimension_numbers = #tpu.dot_dimension_numbers<[1], [0], [0], [1], [0, 0, 1, 1], [], []>} : vector<32x32xbf16>, vector<32x256xbf16>, vector<32x256xf32> -> vector<32x256xf32>
    %c0_3 = arith.constant 0 : index
    %c0_4 = arith.constant 0 : index
    %3 = vector.load %arg3[%c0_3, %c0_4] : memref<1x256xf32, #tpu.memory_space<vmem>>, vector<1x256xf32>
    %4 = vector.broadcast %3 : vector<1x256xf32> to vector<32x256xf32>
    %5 = arith.addf %2, %4 : vector<32x256xf32>
    %c0_5 = arith.constant 0 : index
    %c0_6 = arith.constant 0 : index
    %6 = vector.load %arg4[%c0_5, %c0_6] : memref<32x256xf32, #tpu.memory_space<vmem>>, vector<32x256xf32>
    tpu.vector_store %arg4[%c0_5, %c0_6], %5 {strides = array<i32>} : memref<32x256xf32, #tpu.memory_space<vmem>>, vector<32x256xf32>,
    return
  }
  func.func @transform_0(%arg0: i32) -> (i32, i32) {
    %c0_i32 = arith.constant 0 : i32
    %c0_i32_0 = arith.constant 0 : i32
    return %arg0, %c0_i32 : i32, i32
  }
  func.func @transform_1(%arg0: i32) -> (i32, i32) {
    %c0_i32 = arith.constant 0 : i32
    %c0_i32_0 = arith.constant 0 : i32
    %c0_i32_1 = arith.constant 0 : i32
    return %c0_i32, %c0_i32_0 : i32, i32
  }
  func.func @transform_2(%arg0: i32) -> (i32, i32) {
    %c0_i32 = arith.constant 0 : i32
    %c0_i32_0 = arith.constant 0 : i32
    %c0_i32_1 = arith.constant 0 : i32
    return %c0_i32, %c0_i32_0 : i32, i32
  }
  func.func @transform_3(%arg0: i32) -> (i32, i32) {
    %c0_i32 = arith.constant 0 : i32
    %c0_i32_0 = arith.constant 0 : i32
    return %arg0, %c0_i32 : i32, i32
  }
}

</mosaic_0001>

<llo_original>
// kernel: patch_reconstruct.1
$region0: #{patch_reconstruct.1}
  #allocation0 [shape = 'u32[]', space=smem, size = 0x4, offset = 0x4, fixed_abs, tag = 'smem constant byte address 0x4 - core index']
  #allocation1 [shape = 'u32[72,128]{1,0:T(1,128)}', space=vmem, size = 0x9000, scoped, tag = 'internal scratch']
  %s0 = inlined_call_operand.vmem [shape: bf16[32,32], index: 0, kind: input, shape index: {}]
  %s1 = inlined_call_operand.vmem [shape: bf16[32,256], index: 1, kind: input, shape index: {}]
  %s2 = inlined_call_operand.vmem [shape: f32[1,256], index: 2, kind: input, shape index: {}]
  %s3 = inlined_call_operand.vmem [shape: f32[32,256], index: 3, kind: output, shape index: {}]
  %s4 = sld [smem:[#allocation0]]
  $region22: #{patch_reconstruct.1} parent=0
    _
  %s6 = ssub.s32 1, %s4
  %s7 = scalar_select 0, %s6, %s4
  // Predicated region
  $region2: #{patch_reconstruct.1} parent=0 // pred_check
    _
  $region3: #{patch_reconstruct.1} parent=0 // pred_check_branch
    %9 = sbr.rel (0) target = $region5
  $region4: #{patch_reconstruct.1} parent=0 // pred_region
    _
  $region5: #{patch_reconstruct.1} parent=0 // pred_fallthru
    _
  // Predicated region
  $region6: #{patch_reconstruct.1} parent=0 // pred_check
    _
  $region7: #{patch_reconstruct.1} parent=0 // pred_check_branch
    %11 = sbr.rel (0) target = $region9
  $region8: #{patch_reconstruct.1} parent=0 // pred_region
    _
  $region9: #{patch_reconstruct.1} parent=0 // pred_fallthru
    _
  // Predicated region
  $region10: #{patch_reconstruct.1} parent=0 // pred_check
    _
  $region11: #{patch_reconstruct.1} parent=0 // pred_check_branch
    %13 = sbr.rel (0) target = $region13
  $region12: #{patch_reconstruct.1} parent=0 // pred_region
    _
  $region13: #{patch_reconstruct.1} parent=0 // pred_fallthru
    _
  %v15 = vld [vmem:[%s0] sm:$0xf]
  %v16 = vld [vmem:[%s0 + $0x4] sm:$0xf]
  %v17 = vld [vmem:[%s0 + $0x8] sm:$0xf]
  %v18 = vld [vmem:[%s0 + $0xc] sm:$0xf]
  %v19 = vld [vmem:[%s1] sm:$0xff]
  %v20 = vld [vmem:[%s1 + $0x8] sm:$0xff]
  %v21 = vld [vmem:[%s1 + $0x10] sm:$0xff]
  %v22 = vld [vmem:[%s1 + $0x18] sm:$0xff]
  %v23 = vld [vmem:[%s2] sm:$0x3]
  %v25 = vperm.slane %v23, 0
  %v26 = vperm.slane %v23, 1
  %v33 = vunpack.c.l.b16 %v15
  %v34 = vunpack.c.l.b16 %v16
  %v35 = vunpack.c.l.b16 %v17
  %v36 = vunpack.c.l.b16 %v18
  %v37 = vpack.c.b16 %v34, %v33
  %v38 = vpack.c.b16 %v36, %v35
  %v43 = vunpack.c.l.b16 %v19
  %v44 = vunpack.c.h.b16 %v19
  %v45 = vunpack.c.l.b16 %v20
  %v46 = vunpack.c.h.b16 %v20
  %v47 = vunpack.c.l.b16 %v21
  %v48 = vunpack.c.h.b16 %v21
  %v49 = vunpack.c.l.b16 %v22
  %v50 = vunpack.c.h.b16 %v22
  %v51 = vpack.c.b16 %v45, %v43
  %v52 = vpack.c.b16 %v46, %v44
  %v53 = vpack.c.b16 %v49, %v47
  %v54 = vpack.c.b16 %v50, %v48
  %vm59 = vcmask 261120
  %v61 = vsel %vm59, %v37, 0
  %v64 = vsel %vm59, %v38, 0
  %66 = vmatpush.bf16.msra.mxu0 0
  %67 = vmatpush.bf16.msra.mxu0 0
  %68 = vmatpush.bf16.msra.mxu0 0
  %69 = vmatpush.bf16.msra.mxu0 0
  %70 = vmatpush.bf16.msra.mxu0 0
  %71 = vmatpush.bf16.msra.mxu0 0
  %72 = vmatpush.bf16.msra.mxu0 %v53
  %73 = vmatpush.bf16.msra.mxu0 %v51
  %74 = vmatmul.bf16.gmra.mxu0 %v61
  %v75 = vpop.f32.mrf.mxu0
  %v76 = vadd.f32 %v25, %v75
  %v77 = vpop.f32.mrf.mxu0
  %v78 = vadd.f32 %v25, %v77
  %79 = vmatmul.bf16.gmra.mxu0 %v64
  %v80 = vpop.f32.mrf.mxu0
  %v81 = vadd.f32 %v25, %v80
  %v82 = vpop.f32.mrf.mxu0
  %v83 = vadd.f32 %v25, %v82
  %84 = vdwg.mxu0
  %85 = vmatpush.bf16.msra.mxu0 0
  %86 = vmatpush.bf16.msra.mxu0 0
  %87 = vmatpush.bf16.msra.mxu0 0
  %88 = vmatpush.bf16.msra.mxu0 0
  %89 = vmatpush.bf16.msra.mxu0 0
  %90 = vmatpush.bf16.msra.mxu0 0
  %91 = vmatpush.bf16.msra.mxu0 %v54
  %92 = vmatpush.bf16.msra.mxu0 %v52
  %93 = vmatmul.bf16.gmra.mxu0 %v61
  %v94 = vpop.f32.mrf.mxu0
  %v95 = vadd.f32 %v26, %v94
  %v96 = vpop.f32.mrf.mxu0
  %v97 = vadd.f32 %v26, %v96
  %98 = vmatmul.bf16.gmra.mxu0 %v64
  %v99 = vpop.f32.mrf.mxu0
  %v100 = vadd.f32 %v26, %v99
  %v101 = vpop.f32.mrf.mxu0
  %v102 = vadd.f32 %v26, %v101
  %103 = vdwg.mxu0
  %104 = vst [vmem:[%s3] sm:$0xff] %v76
  %105 = vst [vmem:[%s3 + $0x8] sm:$0xff] %v95
  %106 = vst [vmem:[%s3 + $0x10] sm:$0xff] %v78
  %107 = vst [vmem:[%s3 + $0x18] sm:$0xff] %v97
  %108 = vst [vmem:[%s3 + $0x20] sm:$0xff] %v81
  %109 = vst [vmem:[%s3 + $0x28] sm:$0xff] %v100
  %110 = vst [vmem:[%s3 + $0x30] sm:$0xff] %v83
  %111 = vst [vmem:[%s3 + $0x38] sm:$0xff] %v102
  // Predicated region
  $region14: #{patch_reconstruct.1} parent=0 // pred_check
    _
  $region15: #{patch_reconstruct.1} parent=0 // pred_check_branch
    %113 = sbr.rel (0) target = $region17
  $region16: #{patch_reconstruct.1} parent=0 // pred_region
    _
  $region17: #{patch_reconstruct.1} parent=0 // pred_fallthru
    _
  // Predicated region
  $region18: #{patch_reconstruct.1} parent=0 // pred_check
    _
  $region19: #{patch_reconstruct.1} parent=0 // pred_check_branch
    %115 = sbr.rel (0) target = $region21
  $region20: #{patch_reconstruct.1} parent=0 // pred_region
    _
  $region21: #{patch_reconstruct.1} parent=0 // pred_fallthru
    _

</llo_original>
